<compile_context>
chip_gen: v7x
topology: tpu7x:2x2x1
jax: 0.10.0
libtpu: 0.0.40
codegen_flags: <defaults>
</compile_context>

<pallas_src>
from functools import partial

import jax
import jax.numpy as jnp
from jax import lax
from jax.experimental import pallas as pl
from jax.experimental.pallas import tpu as pltpu


def _make_linear_kernel(scale: float):
    """Tiled (x @ W^T + b) * scale.  Grid = (M//tm, N//tn, K//tk); K is the
    reduction axis (last, 'arbitrary'); the output tile stays resident in a
    f32 VMEM accumulator across it.  Bias, scale and the single cast/store
    happen only on the final K step."""
    scale = float(scale)

    def kernel(x_ref, w_ref, b_ref, o_ref, acc_ref):
        k = pl.program_id(2)

        @pl.when(k == 0)
        def _():
            acc_ref[...] = jnp.zeros_like(acc_ref)

        # x_ref: (tm, tk); w_ref: (tn, tk) in PyTorch (out, in) layout.
        # Contract last axis of both -> MXU matmul with transposed RHS,
        # no weight transpose materialized in HBM or VMEM.
        acc_ref[...] += lax.dot_general(
            x_ref[...], w_ref[...],
            dimension_numbers=(((1,), (1,)), ((), ())),
            preferred_element_type=jnp.float32)

        @pl.when(k == pl.num_programs(2) - 1)
        def _():
            y = (acc_ref[...] + b_ref[...]) * jnp.float32(scale)
            o_ref[...] = y.astype(o_ref.dtype)

    return kernel


def _pick_tile(dim: int, target: int, align: int) -> int:
    """Largest tile <= target that divides `dim` and is `align`-aligned;
    falls back to the full dimension (full-extent blocks are always legal)."""
    if dim <= target:
        return dim
    t = (target // align) * align
    while t >= align:
        if dim % t == 0:
            return t
        t -= align
    return dim


def _linear_pallas(x2, weight, bias2, scale, *, tm, tn, tk):
    M, K = x2.shape
    N = weight.shape[0]
    grid = (M // tm, N // tn, K // tk)
    return pl.pallas_call(
        _make_linear_kernel(scale),
        out_shape=jax.ShapeDtypeStruct((M, N), x2.dtype),
        grid_spec=pltpu.PrefetchScalarGridSpec(
            num_scalar_prefetch=0,
            grid=grid,
            in_specs=[
                pl.BlockSpec((tm, tk), lambda i, j, k: (i, k)),   # x tile
                pl.BlockSpec((tn, tk), lambda i, j, k: (j, k)),   # W tile (out,in)
                pl.BlockSpec((1, tn), lambda i, j, k: (0, j)),    # bias tile
            ],
            out_specs=pl.BlockSpec((tm, tn), lambda i, j, k: (i, j)),
            scratch_shapes=[pltpu.VMEM((tm, tn), jnp.float32)],
        ),
        compiler_params=pltpu.CompilerParams(
            dimension_semantics=("parallel", "parallel", "arbitrary")),
    )(x2, weight, bias2)


@partial(jax.jit, static_argnames=("keep_prob", "training"))
def drop_path_linear(x, weight, bias, key=None, *, keep_prob=0.9, training=True):
    """DropPath(Linear) forward.

    x:      (B, S, H_in)  float32, feature axis last (lane axis)
    weight: (H_out, H_in) float32  (PyTorch Linear convention, no transpose)
    bias:   (H_out,)      float32
    """
    B, S, H_in = x.shape
    H_out = weight.shape[0]
    M, K, N = B * S, H_in, H_out

    x2 = x.reshape(M, K)
    b2 = bias.reshape(1, N)

    # Tile sizes: MXU-aligned, comfortably inside scoped VMEM on
    # v5e (16 MiB) / v6e (32 MiB) / v7x (32 of 64 MiB):
    # (256, 256, 512) f32 -> ~2 MiB double-buffered inputs + ~0.5 MiB out/acc.
    # Small demo shapes fall back to full-extent blocks (grid collapses to 1).
    # TODO(synk): for production H not a multiple of 128, pad N/K to 128 for
    # lane-dense stores; consider bf16 operands (f32 accum) on v5e.
    tm = _pick_tile(M, 256, 8)
    tn = _pick_tile(N, 256, 128)
    tk = _pick_tile(K, 512, 128)

    if not training:
        return _linear_pallas(x2, weight, b2, 1.0, tm=tm, tn=tn, tk=tk
                              ).reshape(B, S, N)

    # One on-device uniform draw per forward call (matches `p = random()`),
    # no device->host sync.  The drop branch returns zeros without ever
    # invoking the kernel, so it costs no HBM traffic for x / W / out.
    p = jax.random.uniform(key)
    return lax.cond(
        p <= keep_prob,                                   # original module: drop
        lambda: jnp.zeros((B, S, N), dtype=x.dtype),
        lambda: _linear_pallas(x2, weight, b2, 1.0 / keep_prob,
                               tm=tm, tn=tn, tk=tk).reshape(B, S, N),
    )


def _reference(x, weight, bias, mode, keep_prob):
    y = jnp.einsum("bsh,oh->bso", x, weight) + bias
    if mode == 0:
        return jnp.zeros_like(y)
    if mode == 1:
        return y / keep_prob
    return y


if __name__ == "__main__":
    B, S, H = 2, 8, 32
    keep_prob = 0.9

    key = jax.random.PRNGKey(0)
    kx, kw, kb, kp = jax.random.split(key, 4)

    x = jax.random.normal(kx, (B, S, H), dtype=jnp.float32)
    # Deterministic Linear init (PyTorch-style uniform(-1/sqrt(H), 1/sqrt(H))).
    bound = 1.0 / (H ** 0.5)
    weight = jax.random.uniform(kw, (H, H), minval=-bound, maxval=bound,
                                dtype=jnp.float32)
    bias = jax.random.uniform(kb, (H,), minval=-bound, maxval=bound,
                              dtype=jnp.float32)

    # Training-mode forward (stochastic drop decision, exactly like the module).
    out_train = drop_path_linear(x, weight, bias, kp,
                                 keep_prob=keep_prob, training=True)
    out_train = jax.block_until_ready(out_train)

    # Eval-mode forward exercises the tiled matmul kernel deterministically.
    out_eval = drop_path_linear(x, weight, bias, None,
                                keep_prob=keep_prob, training=False)
    out_eval = jax.block_until_ready(out_eval)
    ref_eval = _reference(x, weight, bias, mode=2, keep_prob=keep_prob)
    assert jnp.allclose(out_eval, ref_eval, atol=1e-5, rtol=1e-5)

    # Check the training branch against the same on-device p decision.
    p = float(jax.random.uniform(kp))
    mode = 0 if p <= keep_prob else 1
    ref_train = _reference(x, weight, bias, mode=mode, keep_prob=keep_prob)
    assert jnp.allclose(out_train, ref_train, atol=1e-5, rtol=1e-5)

    print("KERNEL_OK")
</pallas_src>

<mosaic_0001>
module attributes {stable_mosaic.version = 11 : i64} {
  func.func @kernel(%arg0: i32, %arg1: i32, %arg2: i32, %arg3: memref<16x32xf32, #tpu.memory_space<vmem>>, %arg4: memref<32x32xf32, #tpu.memory_space<vmem>>, %arg5: memref<1x32xf32, #tpu.memory_space<vmem>>, %arg6: memref<16x32xf32, #tpu.memory_space<vmem>>, %arg7: memref<16x32xf32, #tpu.memory_space<vmem>>) attributes {dimension_semantics = [#tpu.dimension_semantics<parallel>, #tpu.dimension_semantics<parallel>, #tpu.dimension_semantics<arbitrary>], iteration_bounds = array<i64: 1, 1, 1>, scalar_prefetch = 0 : i64, scratch_operands = 1 : i64, tpu.core_type = #tpu.core_type<tc>, window_params = [{transform_indices = @transform_0, window_bounds = array<i64: 16, 32>}, {transform_indices = @transform_1, window_bounds = array<i64: 32, 32>}, {transform_indices = @transform_2, window_bounds = array<i64: 1, 32>}, {transform_indices = @transform_3, window_bounds = array<i64: 16, 32>}]} {
    %c0_i32 = arith.constant 0 : i32
    %0 = arith.cmpi eq, %arg2, %c0_i32 : i32
    %1 = arith.extui %0 : i1 to i32
    %c0_i32_0 = arith.constant 0 : i32
    %2 = arith.cmpi ne, %1, %c0_i32_0 : i32
    scf.if %2 {
      %cst_10 = arith.constant 0.000000e+00 : f32
      %12 = vector.broadcast %cst_10 : f32 to vector<16x32xf32>
      %c0_11 = arith.constant 0 : index
      %c0_12 = arith.constant 0 : index
      %13 = vector.load %arg7[%c0_11, %c0_12] : memref<16x32xf32, #tpu.memory_space<vmem>>, vector<16x32xf32>
      tpu.vector_store %arg7[%c0_11, %c0_12], %12 {strides = array<i32>} : memref<16x32xf32, #tpu.memory_space<vmem>>, vector<16x32xf32>,
    } else {
    }
    %c0 = arith.constant 0 : index
    %c0_1 = arith.constant 0 : index
    %3 = vector.load %arg7[%c0, %c0_1] : memref<16x32xf32, #tpu.memory_space<vmem>>, vector<16x32xf32>
    %c0_2 = arith.constant 0 : index
    %c0_3 = arith.constant 0 : index
    %4 = vector.load %arg3[%c0_2, %c0_3] : memref<16x32xf32, #tpu.memory_space<vmem>>, vector<16x32xf32>
    %c0_4 = arith.constant 0 : index
    %c0_5 = arith.constant 0 : index
    %5 = vector.load %arg4[%c0_4, %c0_5] : memref<32x32xf32, #tpu.memory_space<vmem>>, vector<32x32xf32>
    %cst = arith.constant dense<0.000000e+00> : vector<16x32xf32>
    %6 = tpu.matmul %4, %5, %cst {dimension_numbers = #tpu.dot_dimension_numbers<[1], [1], [0], [0], [0, 0, 1, 0], [], []>} : vector<16x32xf32>, vector<32x32xf32>, vector<16x32xf32> -> vector<16x32xf32>
    %7 = arith.addf %3, %6 : vector<16x32xf32>
    %c0_6 = arith.constant 0 : index
    %c0_7 = arith.constant 0 : index
    %8 = vector.load %arg7[%c0_6, %c0_7] : memref<16x32xf32, #tpu.memory_space<vmem>>, vector<16x32xf32>
    tpu.vector_store %arg7[%c0_6, %c0_7], %7 {strides = array<i32>} : memref<16x32xf32, #tpu.memory_space<vmem>>, vector<16x32xf32>,
    %c0_i32_8 = arith.constant 0 : i32
    %9 = arith.cmpi eq, %arg2, %c0_i32_8 : i32
    %10 = arith.extui %9 : i1 to i32
    %c0_i32_9 = arith.constant 0 : i32
    %11 = arith.cmpi ne, %10, %c0_i32_9 : i32
    scf.if %11 {
      %c0_10 = arith.constant 0 : index
      %c0_11 = arith.constant 0 : index
      %12 = vector.load %arg7[%c0_10, %c0_11] : memref<16x32xf32, #tpu.memory_space<vmem>>, vector<16x32xf32>
      %c0_12 = arith.constant 0 : index
      %c0_13 = arith.constant 0 : index
      %13 = vector.load %arg5[%c0_12, %c0_13] : memref<1x32xf32, #tpu.memory_space<vmem>>, vector<1x32xf32>
      %14 = vector.broadcast %13 : vector<1x32xf32> to vector<16x32xf32>
      %15 = arith.addf %12, %14 : vector<16x32xf32>
      %cst_14 = arith.constant 1.11111116 : f32
      %16 = vector.broadcast %cst_14 : f32 to vector<16x32xf32>
      %17 = arith.mulf %15, %16 : vector<16x32xf32>
      %c0_15 = arith.constant 0 : index
      %c0_16 = arith.constant 0 : index
      %18 = vector.load %arg6[%c0_15, %c0_16] : memref<16x32xf32, #tpu.memory_space<vmem>>, vector<16x32xf32>
      tpu.vector_store %arg6[%c0_15, %c0_16], %17 {strides = array<i32>} : memref<16x32xf32, #tpu.memory_space<vmem>>, vector<16x32xf32>,
    } else {
    }
    return
  }
  func.func @transform_0(%arg0: i32, %arg1: i32, %arg2: i32) -> (i32, i32) {
    %c0_i32 = arith.constant 0 : i32
    return %arg0, %arg2 : i32, i32
  }
  func.func @transform_1(%arg0: i32, %arg1: i32, %arg2: i32) -> (i32, i32) {
    %c0_i32 = arith.constant 0 : i32
    return %arg1, %arg2 : i32, i32
  }
  func.func @transform_2(%arg0: i32, %arg1: i32, %arg2: i32) -> (i32, i32) {
    %c0_i32 = arith.constant 0 : i32
    %c0_i32_0 = arith.constant 0 : i32
    return %c0_i32, %arg1 : i32, i32
  }
  func.func @transform_3(%arg0: i32, %arg1: i32, %arg2: i32) -> (i32, i32) {
    %c0_i32 = arith.constant 0 : i32
    return %arg0, %arg1 : i32, i32
  }
}

</mosaic_0001>

<llo_original>
// kernel: branch_0_fun.1
$region0: #{branch_0_fun.1}
  #allocation0 [shape = 'u32[]', space=smem, size = 0x4, offset = 0x4, fixed_abs, tag = 'smem constant byte address 0x4 - core index']
  #allocation1 [shape = 'u32[144,128]{1,0:T(1,128)}', space=vmem, size = 0x12000, scoped, tag = 'internal scratch']
  #allocation2 [shape = 'f32[16,32]{1,0:T(8,128)}', space=vmem, size = 0x2000, scoped, tag = 'scratch operand']
  %s0 = inlined_call_operand.vmem [shape: f32[16,32], index: 0, kind: input, shape index: {}]
  %s1 = inlined_call_operand.vmem [shape: f32[32,32], index: 1, kind: input, shape index: {}]
  %s2 = inlined_call_operand.vmem [shape: f32[1,32], index: 2, kind: input, shape index: {}]
  %s3 = inlined_call_operand.hbm [shape: f32[16,32], index: 3, kind: output, shape index: {}]
  %s4 = sld [smem:[#allocation0]]
  $region30: #{branch_0_fun.1} parent=0
    _
  %s6 = ssub.s32 1, %s4
  %s7 = scalar_select 0, %s6, %s4
  $region1: #{branch_0_fun.1} parent=0
    #allocation3 [shape = 'u8[8192]{0}', space=vmem, size = 0x2000, scoped, tag = 'output window, operand 0, single buffered']
    #allocation4 [shape = 's32[1]{0}', space=sflag, size = 0x4, scoped, tag = 'scoped memory for branch_0_fun.1']
    %8 = vsyncpa [#allocation4], 0
    // Predicated region
    $region2: #{branch_0_fun.1} parent=1 // pred_check
      _
    $region3: #{branch_0_fun.1} parent=1 // pred_check_branch
      %10 = sbr.rel (0) target = $region5
    $region4: #{branch_0_fun.1} parent=1 // pred_region
      _
    $region5: #{branch_0_fun.1} parent=1 // pred_fallthru
      _
    // Predicated region
    $region6: #{branch_0_fun.1} parent=1 // pred_check
      _
    $region7: #{branch_0_fun.1} parent=1 // pred_check_branch
      %12 = sbr.rel (0) target = $region9
    $region8: #{branch_0_fun.1} parent=1 // pred_region
      _
    $region9: #{branch_0_fun.1} parent=1 // pred_fallthru
      _
    // Predicated region
    $region10: #{branch_0_fun.1} parent=1 // pred_check
      _
    $region11: #{branch_0_fun.1} parent=1 // pred_check_branch
      %14 = sbr.rel (0) target = $region13
    $region12: #{branch_0_fun.1} parent=1 // pred_region
      _
    $region13: #{branch_0_fun.1} parent=1 // pred_fallthru
      _
    %p15 = scmp.eq.s32.totalorder 0, 0
    // Predicated region
    $region14: #{branch_0_fun.1} parent=1 // pred_check
      %p16 = pneg %p15
    $region15: #{branch_0_fun.1} parent=1 // pred_check_branch
      %18 = sbr.rel (%p16) target = $region17
    $region16: #{branch_0_fun.1} parent=1 // pred_region
      %vm19 = vcmask 261120
      %20 = vst.msk [vmem:[#allocation2] sm:$0xff] %vm19, 0.0
      %21 = vst.msk [vmem:[#allocation2 + $0x8] sm:$0xff] %vm19, 0.0
    $region17: #{branch_0_fun.1} parent=1 // pred_fallthru
      _
    %v22 = vld [vmem:[#allocation2] sm:$0xff]
    %v23 = vld [vmem:[#allocation2 + $0x8] sm:$0xff]
    %v24 = vld [vmem:[%s0] sm:$0xff]
    %v25 = vld [vmem:[%s0 + $0x8] sm:$0xff]
    %v26 = vld [vmem:[%s1] sm:$0xff]
    %v27 = vld [vmem:[%s1 + $0x8] sm:$0xff]
    %v28 = vld [vmem:[%s1 + $0x10] sm:$0xff]
    %v29 = vld [vmem:[%s1 + $0x18] sm:$0xff]
    %vm30 = vcmask 261120
    %v32 = vsel %vm30, %v24, 0
    %v35 = vsel %vm30, %v25, 0
    %v38 = vsel %vm30, %v26, 0
    %v41 = vsel %vm30, %v27, 0
    %v44 = vsel %vm30, %v28, 0
    %v47 = vsel %vm30, %v29, 0
    %49 = vmatprep.subr.mxu0 0.0
    %50 = vmatpush1.xpose.msra.mxu0 %v38
    %51 = vmatprep.subr.mxu0 0.0
    %52 = vmatpush1.xpose.msra.mxu0 %v41
    %53 = vmatprep.subr.mxu0 0.0
    %54 = vmatpush1.xpose.msra.mxu0 %v44
    %55 = vmatprep.subr.mxu0 0.0
    %56 = vmatpush1.xpose.msra.mxu0 %v47
    %57 = vmatprep.subr.mxu0 0.0
    %58 = vmatpush1.xpose.msra.mxu0 0.0
    %59 = vmatprep.subr.mxu0 0.0
    %60 = vmatpush1.xpose.msra.mxu0 0.0
    %61 = vmatprep.subr.mxu0 0.0
    %62 = vmatpush1.xpose.msra.mxu0 0.0
    %63 = vmatprep.subr.mxu0 0.0
    %64 = vmatpush1.xpose.msra.mxu0 0.0
    %65 = vmatprep.subr.mxu0 0.0
    %66 = vmatpush1.xpose.msra.mxu0 0.0
    %67 = vmatprep.subr.mxu0 0.0
    %68 = vmatpush1.xpose.msra.mxu0 0.0
    %69 = vmatprep.subr.mxu0 0.0
    %70 = vmatpush1.xpose.msra.mxu0 0.0
    %71 = vmatprep.subr.mxu0 0.0
    %72 = vmatpush1.xpose.msra.mxu0 0.0
    %73 = vmatprep.subr.mxu0 0.0
    %74 = vmatpush1.xpose.msra.mxu0 0.0
    %75 = vmatprep.subr.mxu0 0.0
    %76 = vmatpush1.xpose.msra.mxu0 0.0
    %77 = vmatprep.subr.mxu0 0.0
    %78 = vmatpush1.xpose.msra.mxu0 0.0
    %79 = vmatprep.subr.mxu0 0.0
    %80 = vmatpush1.xpose.msra.mxu0 0.0
    %81 = vmatprep.subr.mxu0 0.0
    %82 = vmatpush1.xpose.msra.mxu0 0.0
    %83 = vmatprep.subr.mxu0 0.0
    %84 = vmatpush1.xpose.msra.mxu0 0.0
    %85 = vmatprep.subr.mxu0 0.0
    %86 = vmatpush1.xpose.msra.mxu0 0.0
    %87 = vmatprep.subr.mxu0 0.0
    %88 = vmatpush1.xpose.msra.mxu0 0.0
    %89 = vmatprep.subr.mxu0 0.0
    %90 = vmatpush1.xpose.msra.mxu0 0.0
    %91 = vmatprep.subr.mxu0 0.0
    %92 = vmatpush1.xpose.msra.mxu0 0.0
    %93 = vmatprep.subr.mxu0 0.0
    %94 = vmatpush1.xpose.msra.mxu0 0.0
    %95 = vmatprep.subr.mxu0 0.0
    %96 = vmatpush1.xpose.msra.mxu0 0.0
    %97 = vmatprep.subr.mxu0 0.0
    %98 = vmatpush1.xpose.msra.mxu0 0.0
    %99 = vmatprep.subr.mxu0 0.0
    %100 = vmatpush1.xpose.msra.mxu0 0.0
    %101 = vmatprep.subr.mxu0 0.0
    %102 = vmatpush1.xpose.msra.mxu0 0.0
    %103 = vmatprep.subr.mxu0 0.0
    %104 = vmatpush1.xpose.msra.mxu0 0.0
    %105 = vmatprep.subr.mxu0 0.0
    %106 = vmatpush1.xpose.msra.mxu0 0.0
    %107 = vmatprep.subr.mxu0 0.0
    %108 = vmatpush1.xpose.msra.mxu0 0.0
    %109 = vmatprep.subr.mxu0 0.0
    %110 = vmatpush1.xpose.msra.mxu0 0.0
    %111 = vmatprep.subr.mxu0 0.0
    %112 = vmatpush1.xpose.msra.mxu0 0.0
    %113 = vmatprep.mubr.f32.mxu0 0.0
    %114 = vmatmul.mubr.f32.gmra.mrb[0].mxu0 %v32
    %v115 = vpop.f32.mrb[0].mxu0
    %v116 = vadd.f32 0.0, %v115
    %v117 = vpop.f32.mrb[0].mxu0
    %118 = vmatprep.mubr.f32.mxu0 0.0
    %119 = vmatmul.mubr.f32.gmra.mrb[0].mxu0 %v35
    %v120 = vpop.f32.mrb[0].mxu0
    %v121 = vadd.f32 0.0, %v120
    %v122 = vpop.f32.mrb[0].mxu0
    %123 = vdwg.mxu0
    %v124 = vadd.f32 %v22, %v116
    %v125 = vadd.f32 %v23, %v121
    %126 = vst.msk [vmem:[#allocation2] sm:$0xff] %vm30, %v124
    %127 = vst.msk [vmem:[#allocation2 + $0x8] sm:$0xff] %vm30, %v125
    // Predicated region
    $region18: #{branch_0_fun.1} parent=1 // pred_check
      %p128 = pneg %p15
    $region19: #{branch_0_fun.1} parent=1 // pred_check_branch
      %130 = sbr.rel (%p128) target = $region21
    $region20: #{branch_0_fun.1} parent=1 // pred_region
      %v131 = vld [vmem:[#allocation2] sm:$0xff]
      %v132 = vld [vmem:[#allocation2 + $0x8] sm:$0xff]
      %v133 = vld [vmem:[%s2] sm:$0x1]
      %v135 = vlaneseq
      %v136 = vshrl.u32 %v135, 7
      %v137 = vsub.s32 0, %v136
      %v138 = vrot.slane %v133, %v137
      %v140 = vadd.f32 %v131, %v138
      %v141 = vadd.f32 %v132, %v138
      %v142 = vmul.f32 %v140, 1.1111112
      %v143 = vmul.f32 %v141, 1.1111112
      %144 = vst.msk [vmem:[#allocation3] sm:$0xff] %vm30, %v142
      %145 = vst.msk [vmem:[#allocation3 + $0x8] sm:$0xff] %vm30, %v143
    $region21: #{branch_0_fun.1} parent=1 // pred_fallthru
      _
    // Predicated region
    $region22: #{branch_0_fun.1} parent=1 // pred_check
      _
    $region23: #{branch_0_fun.1} parent=1 // pred_check_branch
      %147 = sbr.rel (0) target = $region25
    $region24: #{branch_0_fun.1} parent=1 // pred_region
      %s149 = ssub.s32 256, 256
      %150 = vsyncadd [#allocation4], %s149
      %s151 = sshll.u32 [#allocation3], 4
      %s152 = int_to_ptr.vmem [resolvable:$true] %s151
      %157 = dma.vmem_to_hbm [thread:$0]  %s152, 256, %s3, [#allocation4], 128, 128, 8
    $region25: #{branch_0_fun.1} parent=1 // pred_fallthru
      _
    // Predicated region
    $region26: #{branch_0_fun.1} parent=1 // pred_check
      _
    $region27: #{branch_0_fun.1} parent=1 // pred_check_branch
      %159 = sbr.rel (0) target = $region29
    $region28: #{branch_0_fun.1} parent=1 // pred_region
      %160 = dma.done [#allocation4], 256
    $region29: #{branch_0_fun.1} parent=1 // pred_fallthru
      _
    %161 = vsyncpa [#allocation4], 1

</llo_original>
